<compile_context>
chip_gen: v7x
topology: tpu7x:2x2x1
jax: 0.10.0
libtpu: 0.0.40
codegen_flags: <defaults>
</compile_context>

<pallas_src>
import jax
import jax.numpy as jnp
from jax.experimental import pallas as pl
from jax.experimental.pallas import tpu as pltpu


def _round_up(x: int, m: int) -> int:
    return ((x + m - 1) // m) * m


def _default_batch_tile(B: int) -> int:
    # Big tiles amortize the per-grid-step overhead; keep >=2 tiles when the
    # batch allows it so the "parallel" batch axis can shard across v7x's 2 TCs.
    half = _round_up(max(B // 2, 16), 16)
    return min(2048, half)


def dueling_head_kernel(x_ref, wphi_ref, bphi_ref, whead_ref, bhead_ref, out_ref):
    # Cast x on the VPU (no-op for the f32 path); hides under the input DMA.
    x = x_ref[...].astype(wphi_ref.dtype)

    # phi body: MXU matmul, f32 accumulation, bias + ReLU in f32 on the VPU.
    h = jnp.dot(x, wphi_ref[...], preferred_element_type=jnp.float32)
    h = jnp.maximum(h + bphi_ref[...], 0.0)

    # Folded dueling head (value head + advantage-mean already folded in).
    out = jnp.dot(h.astype(whead_ref.dtype), whead_ref[...],
                  preferred_element_type=jnp.float32)
    out_ref[...] = (out + bhead_ref[...]).astype(out_ref.dtype)


def prepare_dueling_params(w_phi, b_phi, w_adv, b_adv, w_val, b_val,
                           *, compute_dtype=jnp.bfloat16):
    """One-time host-side fold + cast. Call once and reuse across forward calls."""
    SUP = w_val.shape[1]
    # TODO(synk): flat `adv + val - adv.mean(1)` only matches the torch module for
    # support_dim == 1 (for SUP > 1 the torch broadcast itself is ill-defined).
    assert SUP == 1, "DuelingHead flat combination requires support_dim == 1"

    # Exact algebraic fold in f32, THEN cast to the MXU operand dtype.
    w_fold = w_adv - jnp.mean(w_adv, axis=1, keepdims=True) + w_val   # (HID, OUT)
    b_fold = b_adv - jnp.mean(b_adv, axis=1, keepdims=True) + b_val   # (1, OUT)

    return {
        "w_phi": w_phi.astype(compute_dtype),
        "b_phi": b_phi.astype(jnp.float32),
        "w_head": w_fold.astype(compute_dtype),
        "b_head": b_fold.astype(jnp.float32),
    }


def dueling_head_forward(x, params, *, out_dtype=None, batch_tile=None):
    B, IN = x.shape
    HID = params["w_phi"].shape[1]
    OUT = params["w_head"].shape[1]

    # bf16 output by default: halves the dominant HBM write stream (f32 acc kept
    # inside the kernel; downcast happens at the final store).
    if out_dtype is None:
        out_dtype = params["w_phi"].dtype

    if batch_tile is None:
        batch_tile = _default_batch_tile(B)
    # Multiple of 16 sublane-rows (valid for both f32 and bf16 tiles); never
    # larger than the (rounded) batch.
    batch_tile = min(_round_up(batch_tile, 16), _round_up(B, 16))

    grid = (pl.cdiv(B, batch_tile),)   # ragged batch handled by boundary masking

    # Advisory cost estimate so XLA schedules sensibly around the custom call.
    flops = 2 * B * IN * HID + 2 * B * HID * OUT
    bytes_accessed = (
        x.size * x.dtype.itemsize
        + B * OUT * jnp.dtype(out_dtype).itemsize
        + sum(int(p.size) * p.dtype.itemsize for p in params.values())
    )
    cost = pl.CostEstimate(flops=flops, transcendentals=0,
                           bytes_accessed=bytes_accessed)

    return pl.pallas_call(
        dueling_head_kernel,
        out_shape=jax.ShapeDtypeStruct((B, OUT), out_dtype),
        grid=grid,
        in_specs=[
            pl.BlockSpec((batch_tile, IN), lambda i: (i, 0)),   # x streamed per batch tile (f32, cast in-kernel)
            pl.BlockSpec((IN, HID), lambda i: (0, 0)),          # weights/biases resident in VMEM
            pl.BlockSpec((1, HID), lambda i: (0, 0)),
            pl.BlockSpec((HID, OUT), lambda i: (0, 0)),
            pl.BlockSpec((1, OUT), lambda i: (0, 0)),
        ],
        out_specs=pl.BlockSpec((batch_tile, OUT), lambda i: (i, 0)),
        compiler_params=pltpu.CompilerParams(
            dimension_semantics=("parallel",),   # shard batch tiles across v7x's 2 TCs
        ),
        cost_estimate=cost,
    )(x, params["w_phi"], params["b_phi"], params["w_head"], params["b_head"])


def reference_forward(x, w_phi, b_phi, w_adv, b_adv, w_val, b_val):
    h = jnp.maximum(x @ w_phi + b_phi, 0.0)
    adv = h @ w_adv + b_adv
    val = h @ w_val + b_val
    return adv + val - adv.mean(axis=1, keepdims=True)


if __name__ == "__main__":
    # Small shapes consistent with the module:
    #   batch=40, phi: 32 -> 64, output_dim=6, support_dim=1.
    B, IN, HID, OUT, SUP = 40, 32, 64, 6, 1

    key = jax.random.PRNGKey(0)
    k = jax.random.split(key, 7)

    x = jax.random.normal(k[0], (B, IN), dtype=jnp.float32)

    # Deterministic synthetic parameters (Linear weights stored as [in, out]).
    w_phi = jax.random.uniform(k[1], (IN, HID), jnp.float32, -0.1, 0.1)
    b_phi = jax.random.uniform(k[2], (1, HID), jnp.float32, -0.1, 0.1)
    w_adv = jax.random.uniform(k[3], (HID, OUT * SUP), jnp.float32, -0.1, 0.1)
    b_adv = jax.random.uniform(k[4], (1, OUT * SUP), jnp.float32, -0.1, 0.1)
    w_val = jax.random.uniform(k[5], (HID, SUP), jnp.float32, -0.1, 0.1)
    b_val = jax.random.uniform(k[6], (1, SUP), jnp.float32, -0.1, 0.1)

    ref = reference_forward(x, w_phi, b_phi, w_adv, b_adv, w_val, b_val)

    # 1) Exact-semantics check: f32 compute + f32 output must match tightly.
    params_f32 = prepare_dueling_params(w_phi, b_phi, w_adv, b_adv, w_val, b_val,
                                        compute_dtype=jnp.float32)
    out_f32 = dueling_head_forward(x, params_f32, out_dtype=jnp.float32,
                                   batch_tile=16)
    jax.block_until_ready(out_f32)
    assert out_f32.shape == (B, OUT * SUP)
    assert jnp.allclose(out_f32, ref, atol=1e-5, rtol=1e-5)

    # 2) Fast default path: bf16 MXU operands, f32 accumulation, bf16 output,
    #    auto batch tiling (>=2 grid tiles here: 40 rows -> 2 tiles of 32).
    params_bf16 = prepare_dueling_params(w_phi, b_phi, w_adv, b_adv, w_val, b_val)
    out_bf16 = dueling_head_forward(x, params_bf16)
    jax.block_until_ready(out_bf16)
    assert out_bf16.shape == (B, OUT * SUP)
    assert jnp.allclose(out_bf16.astype(jnp.float32), ref, atol=2e-2, rtol=2e-2)

    print("KERNEL_OK")
</pallas_src>

<mosaic_0001>
module attributes {stable_mosaic.version = 11 : i64} {
  func.func @dueling_head_kernel(%arg0: i32, %arg1: memref<16x32xf32, #tpu.memory_space<vmem>>, %arg2: memref<32x64xf32, #tpu.memory_space<vmem>>, %arg3: memref<1x64xf32, #tpu.memory_space<vmem>>, %arg4: memref<64x6xf32, #tpu.memory_space<vmem>>, %arg5: memref<1x6xf32, #tpu.memory_space<vmem>>, %arg6: memref<16x6xf32, #tpu.memory_space<vmem>>) attributes {dimension_semantics = [#tpu.dimension_semantics<parallel>], iteration_bounds = array<i64: 3>, scalar_prefetch = 0 : i64, scratch_operands = 0 : i64, tpu.core_type = #tpu.core_type<tc>, window_params = [{transform_indices = @transform_0, window_bounds = array<i64: 16, 32>}, {pipeline_mode = #tpu.pipeline_mode<synchronous>, transform_indices = @transform_1, window_bounds = array<i64: 32, 64>}, {pipeline_mode = #tpu.pipeline_mode<synchronous>, transform_indices = @transform_2, window_bounds = array<i64: 1, 64>}, {pipeline_mode = #tpu.pipeline_mode<synchronous>, transform_indices = @transform_3, window_bounds = array<i64: 64, 6>}, {pipeline_mode = #tpu.pipeline_mode<synchronous>, transform_indices = @transform_4, window_bounds = array<i64: 1, 6>}, {transform_indices = @transform_5, window_bounds = array<i64: 16, 6>}]} {
    %c0 = arith.constant 0 : index
    %c0_0 = arith.constant 0 : index
    %0 = vector.load %arg1[%c0, %c0_0] : memref<16x32xf32, #tpu.memory_space<vmem>>, vector<16x32xf32>
    %c0_1 = arith.constant 0 : index
    %c0_2 = arith.constant 0 : index
    %1 = vector.load %arg2[%c0_1, %c0_2] : memref<32x64xf32, #tpu.memory_space<vmem>>, vector<32x64xf32>
    %cst = arith.constant dense<0.000000e+00> : vector<16x64xf32>
    %2 = tpu.matmul %0, %1, %cst {dimension_numbers = #tpu.dot_dimension_numbers<[1], [0], [0], [1], [0, 0, 1, 1], [], []>} : vector<16x32xf32>, vector<32x64xf32>, vector<16x64xf32> -> vector<16x64xf32>
    %c0_3 = arith.constant 0 : index
    %c0_4 = arith.constant 0 : index
    %3 = vector.load %arg3[%c0_3, %c0_4] : memref<1x64xf32, #tpu.memory_space<vmem>>, vector<1x64xf32>
    %4 = vector.broadcast %3 : vector<1x64xf32> to vector<16x64xf32>
    %5 = arith.addf %2, %4 : vector<16x64xf32>
    %cst_5 = arith.constant 0.000000e+00 : f32
    %6 = vector.broadcast %cst_5 : f32 to vector<16x64xf32>
    %7 = arith.maximumf %5, %6 : vector<16x64xf32>
    %c0_6 = arith.constant 0 : index
    %c0_7 = arith.constant 0 : index
    %8 = vector.load %arg4[%c0_6, %c0_7] : memref<64x6xf32, #tpu.memory_space<vmem>>, vector<64x6xf32>
    %cst_8 = arith.constant dense<0.000000e+00> : vector<16x6xf32>
    %9 = tpu.matmul %7, %8, %cst_8 {dimension_numbers = #tpu.dot_dimension_numbers<[1], [0], [0], [1], [0, 0, 1, 1], [], []>} : vector<16x64xf32>, vector<64x6xf32>, vector<16x6xf32> -> vector<16x6xf32>
    %c0_9 = arith.constant 0 : index
    %c0_10 = arith.constant 0 : index
    %10 = vector.load %arg5[%c0_9, %c0_10] : memref<1x6xf32, #tpu.memory_space<vmem>>, vector<1x6xf32>
    %11 = vector.broadcast %10 : vector<1x6xf32> to vector<16x6xf32>
    %12 = arith.addf %9, %11 : vector<16x6xf32>
    %c0_11 = arith.constant 0 : index
    %c0_12 = arith.constant 0 : index
    %13 = vector.load %arg6[%c0_11, %c0_12] : memref<16x6xf32, #tpu.memory_space<vmem>>, vector<16x6xf32>
    tpu.vector_store %arg6[%c0_11, %c0_12], %12 {strides = array<i32>} : memref<16x6xf32, #tpu.memory_space<vmem>>, vector<16x6xf32>,
    return
  }
  func.func @transform_0(%arg0: i32) -> (i32, i32) {
    %c0_i32 = arith.constant 0 : i32
    %c0_i32_0 = arith.constant 0 : i32
    return %arg0, %c0_i32 : i32, i32
  }
  func.func @transform_1(%arg0: i32) -> (i32, i32) {
    %c0_i32 = arith.constant 0 : i32
    %c0_i32_0 = arith.constant 0 : i32
    %c0_i32_1 = arith.constant 0 : i32
    return %c0_i32, %c0_i32_0 : i32, i32
  }
  func.func @transform_2(%arg0: i32) -> (i32, i32) {
    %c0_i32 = arith.constant 0 : i32
    %c0_i32_0 = arith.constant 0 : i32
    %c0_i32_1 = arith.constant 0 : i32
    return %c0_i32, %c0_i32_0 : i32, i32
  }
  func.func @transform_3(%arg0: i32) -> (i32, i32) {
    %c0_i32 = arith.constant 0 : i32
    %c0_i32_0 = arith.constant 0 : i32
    %c0_i32_1 = arith.constant 0 : i32
    return %c0_i32, %c0_i32_0 : i32, i32
  }
  func.func @transform_4(%arg0: i32) -> (i32, i32) {
    %c0_i32 = arith.constant 0 : i32
    %c0_i32_0 = arith.constant 0 : i32
    %c0_i32_1 = arith.constant 0 : i32
    return %c0_i32, %c0_i32_0 : i32, i32
  }
  func.func @transform_5(%arg0: i32) -> (i32, i32) {
    %c0_i32 = arith.constant 0 : i32
    %c0_i32_0 = arith.constant 0 : i32
    return %arg0, %c0_i32 : i32, i32
  }
}

</mosaic_0001>

<llo_original>
// kernel: tpu_custom_call.1
$region0: #{tpu_custom_call.1}
  #allocation0 [shape = 'u32[]', space=smem, size = 0x4, offset = 0x4, fixed_abs, tag = 'smem constant byte address 0x4 - core index']
  #allocation1 [shape = 'u32[144,128]{1,0:T(1,128)}', space=vmem, size = 0x12000, scoped, tag = 'internal scratch']
  %s0 = inlined_call_operand.vmem [shape: f32[40,32], index: 0, kind: input, shape index: {}]
  %s1 = inlined_call_operand.vmem [shape: f32[32,64], index: 1, kind: input, shape index: {}]
  %s2 = inlined_call_operand.vmem [shape: f32[1,64], index: 2, kind: input, shape index: {}]
  %s3 = inlined_call_operand.vmem [shape: f32[64,6], index: 3, kind: input, shape index: {}]
  %s4 = inlined_call_operand.vmem [shape: f32[1,6], index: 4, kind: input, shape index: {}]
  %s5 = inlined_call_operand.vmem [shape: f32[40,6], index: 5, kind: output, shape index: {}]
  %s6 = sld [smem:[#allocation0]]
  $region101: #{tpu_custom_call.1} parent=0
    _
  %s8 = ssub.s32 1, %s6
  %s9 = scalar_select 0, %s8, %s6
  $region1: #{tpu_custom_call.1} parent=0
    #allocation2 [shape = 'u8[16384]{0}', space=vmem, size = 0x4000, scoped, tag = 'output window, operand 0']
    loop: start=0, step=1, limit=5
    $region2: #{tpu_custom_call.1} parent=1 // loop_pre_header
      _
    $region3: #{tpu_custom_call.1} parent=1 // loop_header
      %s11 = sphi 0, %s15
      %p12 = scmp.ge.s32.totalorder %s11, 5
      %s21 = sphi 0, %s23
      %s24 = sphi 0, %s21
      %s25 = sphi 0, %s24
      %s41 = sphi 0, %s25
      %s45 = sphi 0, %s45
      %s47 = sphi 0, %s45
      %s48 = sphi 0, %s47
      %s62 = sphi 0, %s48
      %s66 = sphi 0, %s66
      %s68 = sphi 0, %s66
      %s69 = sphi 0, %s68
      %s83 = sphi 0, %s69
      %s87 = sphi 0, %s87
      %s89 = sphi 0, %s87
      %s90 = sphi 0, %s89
      %s104 = sphi 0, %s90
      %s108 = sphi 0, %s108
      %s110 = sphi 0, %s108
      %s111 = sphi 0, %s110
      %s125 = sphi 0, %s111
      %s131 = sphi 0, %s133
      %s134 = sphi 0, %s131
      %s135 = sphi 0, %s134
      %s151 = sphi 0, %s135
    $region4: #{tpu_custom_call.1} parent=1 // loop_header_branch
      %14 = sbr.rel (%p12) target = $region8
    $region5: #{tpu_custom_call.1} parent=1 // loop_body
      %s16 = ssub.s32 %s11, 1
      %s17 = ssub.s32 %s11, 2
      %s18 = sadd.s32 %s11, 1
      %s19 = ssub.s32 %s11, %s18
      %p20 = scmp.eq.s32.totalorder %s19, 0
      %s22 = sadd.s32 %s21, 1
      %s23 = scalar_select %p20, %s21, %s22
      %p26 = pneg %p20
      %p27 = scmp.eq.s32.totalorder %s11, 2
      %p28 = por %p26, %p27
      %p29 = scmp.ne.s32.totalorder %s21, %s24
      %p30 = scmp.eq.s32.totalorder %s11, 0
      %p31 = por %p29, %p30
      %p32 = scmp.ne.s32.totalorder %s21, %s24
      %p33 = scmp.eq.s32.totalorder %s16, 2
      %p34 = por %p32, %p33
      %p35 = scmp.ne.s32.totalorder %s24, %s25
      %p36 = scmp.eq.s32.totalorder %s16, 0
      %p37 = por %p35, %p36
      %p38 = scmp.ne.s32.totalorder %s24, %s25
      %p39 = scmp.eq.s32.totalorder %s17, 2
      %p40 = por %p38, %p39
      %p42 = scmp.ne.s32.totalorder %s25, %s41
      %p43 = scmp.eq.s32.totalorder %s17, 0
      %p44 = por %p42, %p43
      %s46 = sadd.s32 %s45, 1
      %p49 = scmp.eq.s32.totalorder %s11, 2
      %p50 = scmp.ne.s32.totalorder %s45, %s47
      %p51 = scmp.eq.s32.totalorder %s11, 0
      %p52 = por %p50, %p51
      %p53 = scmp.ne.s32.totalorder %s45, %s47
      %p54 = scmp.eq.s32.totalorder %s16, 2
      %p55 = por %p53, %p54
      %p56 = scmp.ne.s32.totalorder %s47, %s48
      %p57 = scmp.eq.s32.totalorder %s16, 0
      %p58 = por %p56, %p57
      %p59 = scmp.ne.s32.totalorder %s47, %s48
      %p60 = scmp.eq.s32.totalorder %s17, 2
      %p61 = por %p59, %p60
      %p63 = scmp.ne.s32.totalorder %s48, %s62
      %p64 = scmp.eq.s32.totalorder %s17, 0
      %p65 = por %p63, %p64
      %s67 = sadd.s32 %s66, 1
      %p70 = scmp.eq.s32.totalorder %s11, 2
      %p71 = scmp.ne.s32.totalorder %s66, %s68
      %p72 = scmp.eq.s32.totalorder %s11, 0
      %p73 = por %p71, %p72
      %p74 = scmp.ne.s32.totalorder %s66, %s68
      %p75 = scmp.eq.s32.totalorder %s16, 2
      %p76 = por %p74, %p75
      %p77 = scmp.ne.s32.totalorder %s68, %s69
      %p78 = scmp.eq.s32.totalorder %s16, 0
      %p79 = por %p77, %p78
      %p80 = scmp.ne.s32.totalorder %s68, %s69
      %p81 = scmp.eq.s32.totalorder %s17, 2
      %p82 = por %p80, %p81
      %p84 = scmp.ne.s32.totalorder %s69, %s83
      %p85 = scmp.eq.s32.totalorder %s17, 0
      %p86 = por %p84, %p85
      %s88 = sadd.s32 %s87, 1
      %p91 = scmp.eq.s32.totalorder %s11, 2
      %p92 = scmp.ne.s32.totalorder %s87, %s89
      %p93 = scmp.eq.s32.totalorder %s11, 0
      %p94 = por %p92, %p93
      %p95 = scmp.ne.s32.totalorder %s87, %s89
      %p96 = scmp.eq.s32.totalorder %s16, 2
      %p97 = por %p95, %p96
      %p98 = scmp.ne.s32.totalorder %s89, %s90
      %p99 = scmp.eq.s32.totalorder %s16, 0
      %p100 = por %p98, %p99
      %p101 = scmp.ne.s32.totalorder %s89, %s90
      %p102 = scmp.eq.s32.totalorder %s17, 2
      %p103 = por %p101, %p102
      %p105 = scmp.ne.s32.totalorder %s90, %s104
      %p106 = scmp.eq.s32.totalorder %s17, 0
      %p107 = por %p105, %p106
      %s109 = sadd.s32 %s108, 1
      %p112 = scmp.eq.s32.totalorder %s11, 2
      %p113 = scmp.ne.s32.totalorder %s108, %s110
      %p114 = scmp.eq.s32.totalorder %s11, 0
      %p115 = por %p113, %p114
      %p116 = scmp.ne.s32.totalorder %s108, %s110
      %p117 = scmp.eq.s32.totalorder %s16, 2
      %p118 = por %p116, %p117
      %p119 = scmp.ne.s32.totalorder %s110, %s111
      %p120 = scmp.eq.s32.totalorder %s16, 0
      %p121 = por %p119, %p120
      %p122 = scmp.ne.s32.totalorder %s110, %s111
      %p123 = scmp.eq.s32.totalorder %s17, 2
      %p124 = por %p122, %p123
      %p126 = scmp.ne.s32.totalorder %s111, %s125
      %p127 = scmp.eq.s32.totalorder %s17, 0
      %p128 = por %p126, %p127
      %s129 = ssub.s32 %s11, %s18
      %p130 = scmp.eq.s32.totalorder %s129, 0
      %s132 = sadd.s32 %s131, 1
      %s133 = scalar_select %p130, %s131, %s132
      %p136 = pneg %p130
      %p137 = scmp.eq.s32.totalorder %s11, 2
      %p138 = por %p136, %p137
      %p139 = scmp.ne.s32.totalorder %s131, %s134
      %p140 = scmp.eq.s32.totalorder %s11, 0
      %p141 = por %p139, %p140
      %p142 = scmp.ne.s32.totalorder %s131, %s134
      %p143 = scmp.eq.s32.totalorder %s16, 2
      %p144 = por %p142, %p143
      %p145 = scmp.ne.s32.totalorder %s134, %s135
      %p146 = scmp.eq.s32.totalorder %s16, 0
      %p147 = por %p145, %p146
      %p148 = scmp.ne.s32.totalorder %s134, %s135
      %p149 = scmp.eq.s32.totalorder %s17, 2
      %p150 = por %p148, %p149
      %p152 = scmp.ne.s32.totalorder %s135, %s151
      %p153 = scmp.eq.s32.totalorder %s17, 0
      %p154 = por %p152, %p153
      %p155 = scmp.le.s32.totalorder 1, %s11
      %p156 = scmp.lt.s32.totalorder %s11, 4
      %p157 = pnand %p155, %p156
      %p158 = pneg %p157
      // Predicated region
      $region9: #{tpu_custom_call.1} parent=5 // pred_check
        _
      $region10: #{tpu_custom_call.1} parent=5 // pred_check_branch
        %160 = sbr.rel (%p157) target = $region12
      $region11: #{tpu_custom_call.1} parent=5 // pred_region
        %s161 = ssub.s32 %s11, 1
        // Predicated region
        $region13: #{tpu_custom_call.1} parent=11 // pred_check
          %p162 = pneg %p58
        $region14: #{tpu_custom_call.1} parent=11 // pred_check_branch
          %164 = sbr.rel (%p162) target = $region16
        $region15: #{tpu_custom_call.1} parent=11 // pred_region
          _
        $region16: #{tpu_custom_call.1} parent=11 // pred_fallthru
          _
        // Predicated region
        $region17: #{tpu_custom_call.1} parent=11 // pred_check
          %p165 = pneg %p79
        $region18: #{tpu_custom_call.1} parent=11 // pred_check_branch
          %167 = sbr.rel (%p165) target = $region20
        $region19: #{tpu_custom_call.1} parent=11 // pred_region
          _
        $region20: #{tpu_custom_call.1} parent=11 // pred_fallthru
          _
        // Predicated region
        $region21: #{tpu_custom_call.1} parent=11 // pred_check
          %p168 = pneg %p100
        $region22: #{tpu_custom_call.1} parent=11 // pred_check_branch
          %170 = sbr.rel (%p168) target = $region24
        $region23: #{tpu_custom_call.1} parent=11 // pred_region
          _
        $region24: #{tpu_custom_call.1} parent=11 // pred_fallthru
          _
        // Predicated region
        $region25: #{tpu_custom_call.1} parent=11 // pred_check
          %p171 = pneg %p121
        $region26: #{tpu_custom_call.1} parent=11 // pred_check_branch
          %173 = sbr.rel (%p171) target = $region28
        $region27: #{tpu_custom_call.1} parent=11 // pred_region
          _
        $region28: #{tpu_custom_call.1} parent=11 // pred_fallthru
          _
      $region12: #{tpu_custom_call.1} parent=5 // pred_fallthru
        _
      %p174 = scmp.lt.s32.totalorder %s11, 3
      // Predicated region
      $region29: #{tpu_custom_call.1} parent=5 // pred_check
        %p175 = pneg %p174
      $region30: #{tpu_custom_call.1} parent=5 // pred_check_branch
        %177 = sbr.rel (%p175) target = $region32
      $region31: #{tpu_custom_call.1} parent=5 // pred_region
        // Predicated region
        $region33: #{tpu_custom_call.1} parent=31 // pred_check
          %p178 = pneg %p31
        $region34: #{tpu_custom_call.1} parent=31 // pred_check_branch
          %180 = sbr.rel (%p178) target = $region36
        $region35: #{tpu_custom_call.1} parent=31 // pred_region
          %s181 = smul.u32 2, %s11
          %s182 = ssub.s32 5, %s181
          %p183 = scmp.lt.s32.totalorder %s182, 2
          %s184 = scalar_select %p183, %s182, 2
          %s185 = smul.u32 128, %s184
          %p186 = scmp.lt.s32.totalorder %s181, 4
          %s187 = scalar_select %p186, %s181, 4
          %s188 = smul.addr %s187, 8
          %s189 = scalar_lea.vmem %s0, %s188
          %s190 = smul.u32 2, %s11
          %s191 = ssub.s32 5, %s190
          %p192 = scmp.lt.s32.totalorder %s191, 2
          %s193 = scalar_select %p192, %s191, 2
          %s194 = smul.u32 128, %s193
        $region36: #{tpu_custom_call.1} parent=31 // pred_fallthru
          _
      $region32: #{tpu_custom_call.1} parent=5 // pred_fallthru
        _
      %p195 = scmp.le.s32.totalorder 1, %s11
      %p196 = scmp.lt.s32.totalorder %s11, 4
      %p197 = pnand %p195, %p196
      %p198 = pneg %p197
      // Predicated region
      $region37: #{tpu_custom_call.1} parent=5 // pred_check
        _
      $region38: #{tpu_custom_call.1} parent=5 // pred_check_branch
        %200 = sbr.rel (%p197) target = $region40
      $region39: #{tpu_custom_call.1} parent=5 // pred_region
        %s201 = ssub.s32 %s11, 1
        %s202 = smul.u32 2, %s16
        %s203 = ssub.s32 5, %s202
        %p204 = scmp.lt.s32.totalorder %s203, 2
        %s205 = scalar_select %p204, %s203, 2
        %s206 = smul.u32 128, %s205
        %p207 = scmp.lt.s32.totalorder %s202, 4
        %s208 = scalar_select %p207, %s202, 4
        %s209 = smul.addr %s208, 8
        %s210 = scalar_lea.vmem %s0, %s209
        %p211 = pneg %p37
        %p212 = pneg %p34
        %p213 = pneg %p58
        %p214 = pneg %p55
        %p215 = pneg %p79
        %p216 = pneg %p76
        %p217 = pneg %p100
        %p218 = pneg %p97
        %p219 = pneg %p121
        %p220 = pneg %p118
        %p221 = pneg %p147
        %p222 = pneg %p144
        %s223 = sand.u32 %s134, 1
        %s224 = sand.u32 %s134, 1
        %s225 = smul.addr %s224, 16
        %s226 = scalar_lea.vmem [#allocation2], %s225
        %s227 = smul.u32 2, %s16
        %s228 = ssub.s32 5, %s227
        %p229 = scmp.lt.s32.totalorder %s228, 2
        %s230 = scalar_select %p229, %s228, 2
        %s231 = smul.u32 128, %s230
        %p232 = scmp.lt.s32.totalorder %s227, 4
        %s233 = scalar_select %p232, %s227, 4
        %s234 = smul.addr %s233, 8
        %s235 = scalar_lea.vmem %s0, %s234
        %s236 = smul.u32 2, %s16
        %s237 = ssub.s32 5, %s236
        %p238 = scmp.lt.s32.totalorder %s237, 2
        %s239 = scalar_select %p238, %s237, 2
        %s240 = smul.u32 128, %s239
        %s241 = smul.u32 2, %s16
        %s242 = ssub.s32 5, %s241
        %p243 = scmp.lt.s32.totalorder %s242, 2
        %s244 = scalar_select %p243, %s242, 2
        %s245 = smul.u32 128, %s244
        %v246 = vld [vmem:[%s235] sm:$0xff]
        %v247 = vld [vmem:[%s235 + $0x8] sm:$0xff]
        %v248 = vld [vmem:[%s1] sm:$0xff]
        %v249 = vld [vmem:[%s1 + $0x8] sm:$0xff]
        %v250 = vld [vmem:[%s1 + $0x10] sm:$0xff]
        %v251 = vld [vmem:[%s1 + $0x18] sm:$0xff]
        %v252 = vld [vmem:[%s2] sm:$0x1]
        %v254 = vlaneseq
        %v255 = vshrl.u32 %v254, 7
        %v256 = vsub.s32 0, %v255
        %v257 = vrot.slane %v252, %v256
        %vm259 = vcmask 261120
        %v261 = vsel %vm259, %v246, 0
        %v264 = vsel %vm259, %v247, 0
        %266 = vmatprep.subr.mxu0 0.0
        %267 = vmatpush1.msra.mxu0 %v248
        %268 = vmatprep.subr.mxu0 0.0
        %269 = vmatpush1.msra.mxu0 %v249
        %270 = vmatprep.subr.mxu0 0.0
        %271 = vmatpush1.msra.mxu0 %v250
        %272 = vmatprep.subr.mxu0 0.0
        %273 = vmatpush1.msra.mxu0 %v251
        %274 = vmatprep.subr.mxu0 0.0
        %275 = vmatpush1.msra.mxu0 0.0
        %276 = vmatprep.subr.mxu0 0.0
        %277 = vmatpush1.msra.mxu0 0.0
        %278 = vmatprep.subr.mxu0 0.0
        %279 = vmatpush1.msra.mxu0 0.0
        %280 = vmatprep.subr.mxu0 0.0
        %281 = vmatpush1.msra.mxu0 0.0
        %282 = vmatprep.subr.mxu0 0.0
        %283 = vmatpush1.msra.mxu0 0.0
        %284 = vmatprep.subr.mxu0 0.0
        %285 = vmatpush1.msra.mxu0 0.0
        %286 = vmatprep.subr.mxu0 0.0
        %287 = vmatpush1.msra.mxu0 0.0
        %288 = vmatprep.subr.mxu0 0.0
        %289 = vmatpush1.msra.mxu0 0.0
        %290 = vmatprep.subr.mxu0 0.0
        %291 = vmatpush1.msra.mxu0 0.0
        %292 = vmatprep.subr.mxu0 0.0
        %293 = vmatpush1.msra.mxu0 0.0
        %294 = vmatprep.subr.mxu0 0.0
        %295 = vmatpush1.msra.mxu0 0.0
        %296 = vmatprep.subr.mxu0 0.0
        %297 = vmatpush1.msra.mxu0 0.0
        %298 = vmatprep.subr.mxu0 0.0
        %299 = vmatpush1.msra.mxu0 0.0
        %300 = vmatprep.subr.mxu0 0.0
        %301 = vmatpush1.msra.mxu0 0.0
        %302 = vmatprep.subr.mxu0 0.0
        %303 = vmatpush1.msra.mxu0 0.0
        %304 = vmatprep.subr.mxu0 0.0
        %305 = vmatpush1.msra.mxu0 0.0
        %306 = vmatprep.subr.mxu0 0.0
        %307 = vmatpush1.msra.mxu0 0.0
        %308 = vmatprep.subr.mxu0 0.0
        %309 = vmatpush1.msra.mxu0 0.0
        %310 = vmatprep.subr.mxu0 0.0
        %311 = vmatpush1.msra.mxu0 0.0
        %312 = vmatprep.subr.mxu0 0.0
        %313 = vmatpush1.msra.mxu0 0.0
        %314 = vmatprep.subr.mxu0 0.0
        %315 = vmatpush1.msra.mxu0 0.0
        %316 = vmatprep.subr.mxu0 0.0
        %317 = vmatpush1.msra.mxu0 0.0
        %318 = vmatprep.subr.mxu0 0.0
        %319 = vmatpush1.msra.mxu0 0.0
        %320 = vmatprep.subr.mxu0 0.0
        %321 = vmatpush1.msra.mxu0 0.0
        %322 = vmatprep.subr.mxu0 0.0
        %323 = vmatpush1.msra.mxu0 0.0
        %324 = vmatprep.subr.mxu0 0.0
        %325 = vmatpush1.msra.mxu0 0.0
        %326 = vmatprep.subr.mxu0 0.0
        %327 = vmatpush1.msra.mxu0 0.0
        %328 = vmatprep.subr.mxu0 0.0
        %329 = vmatpush1.msra.mxu0 0.0
        %330 = vmatprep.mubr.f32.mxu0 0.0
        %331 = vmatmul.mubr.f32.gmra.mrb[0].mxu0 %v261
        %v332 = vpop.f32.mrb[0].mxu0
        %v333 = vadd.f32 %v257, %v332
        %v334 = vpop.f32.mrb[0].mxu0
        %335 = vmatprep.mubr.f32.mxu0 0.0
        %336 = vmatmul.mubr.f32.gmra.mrb[0].mxu0 %v264
        %v337 = vpop.f32.mrb[0].mxu0
        %v338 = vadd.f32 %v257, %v337
        %v339 = vpop.f32.mrb[0].mxu0
        %340 = vdwg.mxu0
        %v341 = vmax.f32 %v333, 0.0
        %v342 = vmax.f32 %v338, 0.0
        %v343 = vld [vmem:[%s3] sm:$0xff]
        %v344 = vld [vmem:[%s3 + $0x8] sm:$0xff]
        %v345 = vld [vmem:[%s3 + $0x10] sm:$0xff]
        %v346 = vld [vmem:[%s3 + $0x18] sm:$0xff]
        %v347 = vld [vmem:[%s3 + $0x20] sm:$0xff]
        %v348 = vld [vmem:[%s3 + $0x28] sm:$0xff]
        %v349 = vld [vmem:[%s3 + $0x30] sm:$0xff]
        %v350 = vld [vmem:[%s3 + $0x38] sm:$0xff]
        %v351 = vld [vmem:[%s4] sm:$0x1]
        %v353 = vlaneseq
        %v354 = vshrl.u32 %v353, 7
        %v355 = vsub.s32 0, %v354
        %v356 = vrot.slane %v351, %v355
        %vm358 = vcmask 523264
        %v360 = vsel %vm358, %v341, 0
        %v363 = vsel %vm358, %v342, 0
        %365 = vmatprep.subr.mxu0 0.0
        %366 = vmatpush1.msra.mxu0 %v343
        %367 = vmatprep.subr.mxu0 0.0
        %368 = vmatpush1.msra.mxu0 %v344
        %369 = vmatprep.subr.mxu0 0.0
        %370 = vmatpush1.msra.mxu0 %v345
        %371 = vmatprep.subr.mxu0 0.0
        %372 = vmatpush1.msra.mxu0 %v346
        %373 = vmatprep.subr.mxu0 0.0
        %374 = vmatpush1.msra.mxu0 %v347
        %375 = vmatprep.subr.mxu0 0.0
        %376 = vmatpush1.msra.mxu0 %v348
        %377 = vmatprep.subr.mxu0 0.0
        %378 = vmatpush1.msra.mxu0 %v349
        %379 = vmatprep.subr.mxu0 0.0
        %380 = vmatpush1.msra.mxu0 %v350
        %381 = vmatprep.subr.mxu0 0.0
        %382 = vmatpush1.msra.mxu0 0.0
        %383 = vmatprep.subr.mxu0 0.0
        %384 = vmatpush1.msra.mxu0 0.0
        %385 = vmatprep.subr.mxu0 0.0
        %386 = vmatpush1.msra.mxu0 0.0
        %387 = vmatprep.subr.mxu0 0.0
        %388 = vmatpush1.msra.mxu0 0.0
        %389 = vmatprep.subr.mxu0 0.0
        %390 = vmatpush1.msra.mxu0 0.0
        %391 = vmatprep.subr.mxu0 0.0
        %392 = vmatpush1.msra.mxu0 0.0
        %393 = vmatprep.subr.mxu0 0.0
        %394 = vmatpush1.msra.mxu0 0.0
        %395 = vmatprep.subr.mxu0 0.0
        %396 = vmatpush1.msra.mxu0 0.0
        %397 = vmatprep.subr.mxu0 0.0
        %398 = vmatpush1.msra.mxu0 0.0
        %399 = vmatprep.subr.mxu0 0.0
        %400 = vmatpush1.msra.mxu0 0.0
        %401 = vmatprep.subr.mxu0 0.0
        %402 = vmatpush1.msra.mxu0 0.0
        %403 = vmatprep.subr.mxu0 0.0
        %404 = vmatpush1.msra.mxu0 0.0
        %405 = vmatprep.subr.mxu0 0.0
        %406 = vmatpush1.msra.mxu0 0.0
        %407 = vmatprep.subr.mxu0 0.0
        %408 = vmatpush1.msra.mxu0 0.0
        %409 = vmatprep.subr.mxu0 0.0
        %410 = vmatpush1.msra.mxu0 0.0
        %411 = vmatprep.subr.mxu0 0.0
        %412 = vmatpush1.msra.mxu0 0.0
        %413 = vmatprep.subr.mxu0 0.0
        %414 = vmatpush1.msra.mxu0 0.0
        %415 = vmatprep.subr.mxu0 0.0
        %416 = vmatpush1.msra.mxu0 0.0
        %417 = vmatprep.subr.mxu0 0.0
        %418 = vmatpush1.msra.mxu0 0.0
        %419 = vmatprep.subr.mxu0 0.0
        %420 = vmatpush1.msra.mxu0 0.0
        %421 = vmatprep.subr.mxu0 0.0
        %422 = vmatpush1.msra.mxu0 0.0
        %423 = vmatprep.subr.mxu0 0.0
        %424 = vmatpush1.msra.mxu0 0.0
        %425 = vmatprep.subr.mxu0 0.0
        %426 = vmatpush1.msra.mxu0 0.0
        %427 = vmatprep.subr.mxu0 0.0
        %428 = vmatpush1.msra.mxu0 0.0
        %429 = vmatprep.mubr.f32.mxu0 0.0
        %430 = vmatmul.mubr.f32.gmra.mrb[0].mxu0 %v360
        %v431 = vpop.f32.mrb[0].mxu0
        %v432 = vadd.f32 %v356, %v431
        %v433 = vpop.f32.mrb[0].mxu0
        %434 = vmatprep.mubr.f32.mxu0 0.0
        %435 = vmatmul.mubr.f32.gmra.mrb[0].mxu0 %v363
        %v436 = vpop.f32.mrb[0].mxu0
        %v437 = vadd.f32 %v356, %v436
        %v438 = vpop.f32.mrb[0].mxu0
        %439 = vdwg.mxu0
        %vm440 = vcmask 48128
        %441 = vst.msk [vmem:[%s226] sm:$0xff] %vm440, %v432
        %442 = vst.msk [vmem:[%s226 + $0x8] sm:$0xff] %vm440, %v437
        %s443 = sand.u32 %s134, 1
        %s444 = sand.u32 %s134, 1
        %s445 = smul.addr %s444, 16
        %s446 = scalar_lea.vmem [#allocation2], %s445
        // Predicated region
        $region41: #{tpu_custom_call.1} parent=39 // pred_check
          %p447 = pneg %p144
        $region42: #{tpu_custom_call.1} parent=39 // pred_check_branch
          %449 = sbr.rel (%p447) target = $region44
        $region43: #{tpu_custom_call.1} parent=39 // pred_region
          %s450 = smul.u32 2, %s16
          %s451 = ssub.s32 5, %s450
          %p452 = scmp.lt.s32.totalorder %s451, 2
          %s453 = scalar_select %p452, %s451, 2
          %s454 = smul.u32 128, %s453
          %p455 = scmp.ne.s32.totalorder 0, %s454
          %s456 = smul.addr %s450, 8
          %s457 = scalar_lea.vmem %s5, %s456
          // Predicated region
          $region45: #{tpu_custom_call.1} parent=43 // pred_check
            %p458 = pneg %p455
          $region46: #{tpu_custom_call.1} parent=43 // pred_check_branch
            %460 = sbr.rel (%p458) target = $region48
          $region47: #{tpu_custom_call.1} parent=43 // pred_region
            // Predicated region
            $region49: #{tpu_custom_call.1} parent=47 // pred_check
              _
            $region50: #{tpu_custom_call.1} parent=47 // pred_check_branch
              %462 = sbr.rel (0) target = $region52
            $region51: #{tpu_custom_call.1} parent=47 // pred_region
              // Predicated region
              $region71: #{tpu_custom_call.1} parent=51 // pred_check
                _
              $region72: #{tpu_custom_call.1} parent=51 // pred_check_branch
                %513 = sbr.rel (0) target = $region74
              $region73: #{tpu_custom_call.1} parent=51 // pred_region
                %s514 = sshrl.u32 %s453, 1
                // While loop
                $region75: #{tpu_custom_call.1} parent=73 // loop_pre_header
                  _
                $region76: #{tpu_custom_call.1} parent=73 // loop_header
                  %s516 = sphi 0, %s518
                  %p517 = scmp.ge.s32.totalorder %s516, %s514
                  %s521 = sphi 0, %s530
                  %s522 = sphi %s446, %s533
                  %s523 = sphi %s457, %s534
                $region77: #{tpu_custom_call.1} parent=73 // loop_header_branch
                  %520 = sbr.rel (%p517) target = $region81
                $region78: #{tpu_custom_call.1} parent=73 // loop_body
                  %v524 = vld [vmem:[%s522] sm:$0xff]
                  %525 = vst [vmem:[%s523] sm:$0xff] %v524
                  %v526 = vld [vmem:[%s522 + $0x8] sm:$0xff]
                  %527 = vst [vmem:[%s523 + $0x8] sm:$0xff] %v526
                  %s528 = sadd.s32 1, %s521
                  %p529 = scmp.ge.s32.totalorder %s528, %s514
                  %s530 = scalar_select %p529, 0, %s528
                  %s531 = smul.u32 %s530, 16
                  %s532 = smul.u32 %s530, 16
                  %s533 = scalar_lea.vmem %s446, %s531 [#allocation2]
                  %s534 = scalar_lea.vmem %s457, %s532
                $region79: #{tpu_custom_call.1} parent=73 // loop_footer
                  %s518 = sadd.s32 %s516, 1
                $region80: #{tpu_custom_call.1} parent=73 // loop_footer_branch
                  %515 = sbr.rel target = $region76
                $region81: #{tpu_custom_call.1} parent=73 // loop_exit
                  _
                %s535 = sshrl.u32 %s453, 1
                %s536 = sand.u32 %s453, 1
                %s537 = smul.u32 %s535, 2
                %s538 = smul.u32 8, %s537
                %s539 = scalar_lea.vmem %s446, %s538 [#allocation2]
                %s540 = smul.u32 8, %s537
                %s541 = scalar_lea.vmem %s457, %s540
                // While loop
                $region82: #{tpu_custom_call.1} parent=73 // loop_pre_header
                  _
                $region83: #{tpu_custom_call.1} parent=73 // loop_header
                  %s543 = sphi 0, %s545
                  %p544 = scmp.ge.s32.totalorder %s543, %s536
                  %s548 = sphi 0, %s555
                  %s549 = sphi %s539, %s558
                  %s550 = sphi %s541, %s559
                $region84: #{tpu_custom_call.1} parent=73 // loop_header_branch
                  %547 = sbr.rel (%p544) target = $region88
                $region85: #{tpu_custom_call.1} parent=73 // loop_body
                  %v551 = vld [vmem:[%s549] sm:$0xff]
                  %552 = vst [vmem:[%s550] sm:$0xff] %v551
                  %s553 = sadd.s32 1, %s548
                  %p554 = scmp.ge.s32.totalorder %s553, %s536
                  %s555 = scalar_select %p554, 0, %s553
                  %s556 = smul.u32 %s555, 8
                  %s557 = smul.u32 %s555, 8
                  %s558 = scalar_lea.vmem %s539, %s556 [#allocation2]
                  %s559 = scalar_lea.vmem %s541, %s557
                $region86: #{tpu_custom_call.1} parent=73 // loop_footer
                  %s545 = sadd.s32 %s543, 1
                $region87: #{tpu_custom_call.1} parent=73 // loop_footer_branch
                  %542 = sbr.rel target = $region83
                $region88: #{tpu_custom_call.1} parent=73 // loop_exit
                  _
              $region74: #{tpu_custom_call.1} parent=51 // pred_fallthru
                _
              // Predicated region
              $region89: #{tpu_custom_call.1} parent=51 // pred_check
                _
              $region90: #{tpu_custom_call.1} parent=51 // pred_check_branch
                %561 = sbr.rel target = $region92
              $region91: #{tpu_custom_call.1} parent=51 // pred_region
                _
              $region92: #{tpu_custom_call.1} parent=51 // pred_fallthru
                _
            $region52: #{tpu_custom_call.1} parent=47 // pred_fallthru
              _
            // Predicated region
            $region53: #{tpu_custom_call.1} parent=47 // pred_check
              _
            $region54: #{tpu_custom_call.1} parent=47 // pred_check_branch
              %464 = sbr.rel target = $region56
            $region55: #{tpu_custom_call.1} parent=47 // pred_region
              %s466 = sshrl.u32 %s453, 1
              // While loop
              $region57: #{tpu_custom_call.1} parent=55 // loop_pre_header
                _
              $region58: #{tpu_custom_call.1} parent=55 // loop_header
                %s468 = sphi 0, %s470
                %p469 = scmp.ge.s32.totalorder %s468, %s466
                %s473 = sphi 0, %s482
                %s474 = sphi %s446, %s485
                %s475 = sphi %s457, %s486
              $region59: #{tpu_custom_call.1} parent=55 // loop_header_branch
                %472 = sbr.rel (%p469) target = $region63
              $region60: #{tpu_custom_call.1} parent=55 // loop_body
                %v476 = vld [vmem:[%s474] sm:$0xff]
                %477 = vst [vmem:[%s475] sm:$0xff] %v476
                %v478 = vld [vmem:[%s474 + $0x8] sm:$0xff]
                %479 = vst [vmem:[%s475 + $0x8] sm:$0xff] %v478
                %s480 = sadd.s32 1, %s473
                %p481 = scmp.ge.s32.totalorder %s480, %s466
                %s482 = scalar_select %p481, 0, %s480
                %s483 = smul.u32 %s482, 16
                %s484 = smul.u32 %s482, 16
                %s485 = scalar_lea.vmem %s446, %s483 [#allocation2]
                %s486 = scalar_lea.vmem %s457, %s484
              $region61: #{tpu_custom_call.1} parent=55 // loop_footer
                %s470 = sadd.s32 %s468, 1
              $region62: #{tpu_custom_call.1} parent=55 // loop_footer_branch
                %467 = sbr.rel target = $region58
              $region63: #{tpu_custom_call.1} parent=55 // loop_exit
                _
              %s487 = sshrl.u32 %s453, 1
              %s488 = sand.u32 %s453, 1
              %s489 = smul.u32 %s487, 2
              %s490 = smul.u32 8, %s489
              %s491 = scalar_lea.vmem %s446, %s490 [#allocation2]
              %s492 = smul.u32 8, %s489
              %s493 = scalar_lea.vmem %s457, %s492
              // While loop
              $region64: #{tpu_custom_call.1} parent=55 // loop_pre_header
                _
              $region65: #{tpu_custom_call.1} parent=55 // loop_header
                %s495 = sphi 0, %s497
                %p496 = scmp.ge.s32.totalorder %s495, %s488
                %s500 = sphi 0, %s507
                %s501 = sphi %s491, %s510
                %s502 = sphi %s493, %s511
              $region66: #{tpu_custom_call.1} parent=55 // loop_header_branch
                %499 = sbr.rel (%p496) target = $region70
              $region67: #{tpu_custom_call.1} parent=55 // loop_body
                %v503 = vld [vmem:[%s501] sm:$0xff]
                %504 = vst [vmem:[%s502] sm:$0xff] %v503
                %s505 = sadd.s32 1, %s500
                %p506 = scmp.ge.s32.totalorder %s505, %s488
                %s507 = scalar_select %p506, 0, %s505
                %s508 = smul.u32 %s507, 8
                %s509 = smul.u32 %s507, 8
                %s510 = scalar_lea.vmem %s491, %s508 [#allocation2]
                %s511 = scalar_lea.vmem %s493, %s509
              $region68: #{tpu_custom_call.1} parent=55 // loop_footer
                %s497 = sadd.s32 %s495, 1
              $region69: #{tpu_custom_call.1} parent=55 // loop_footer_branch
                %494 = sbr.rel target = $region65
              $region70: #{tpu_custom_call.1} parent=55 // loop_exit
                _
            $region56: #{tpu_custom_call.1} parent=47 // pred_fallthru
              _
          $region48: #{tpu_custom_call.1} parent=43 // pred_fallthru
            _
          %562 = vnop
        $region44: #{tpu_custom_call.1} parent=39 // pred_fallthru
          _
      $region40: #{tpu_custom_call.1} parent=5 // pred_fallthru
        _
      %p563 = scmp.le.s32.totalorder 2, %s11
      // Predicated region
      $region93: #{tpu_custom_call.1} parent=5 // pred_check
        %p564 = pneg %p563
      $region94: #{tpu_custom_call.1} parent=5 // pred_check_branch
        %566 = sbr.rel (%p564) target = $region96
      $region95: #{tpu_custom_call.1} parent=5 // pred_region
        %s567 = ssub.s32 %s11, 2
        // Predicated region
        $region97: #{tpu_custom_call.1} parent=95 // pred_check
          %p568 = pneg %p150
        $region98: #{tpu_custom_call.1} parent=95 // pred_check_branch
          %570 = sbr.rel (%p568) target = $region100
        $region99: #{tpu_custom_call.1} parent=95 // pred_region
          %s571 = sand.u32 %s135, 1
          %s572 = sand.u32 %s135, 1
          %s573 = smul.addr %s572, 16
          %s574 = scalar_lea.vmem [#allocation2], %s573
        $region100: #{tpu_custom_call.1} parent=95 // pred_fallthru
          _
      $region96: #{tpu_custom_call.1} parent=5 // pred_fallthru
        _
    $region6: #{tpu_custom_call.1} parent=1 // loop_footer
      %s15 = sadd.s32 1, %s11
    $region7: #{tpu_custom_call.1} parent=1 // loop_footer_branch
      %10 = sbr.rel target = $region3
    $region8: #{tpu_custom_call.1} parent=1 // loop_exit
      _

</llo_original>
